<compile_context>
chip_gen: v7x
topology: tpu7x:2x2x1
jax: 0.10.0
libtpu: 0.0.40
codegen_flags: <defaults>
</compile_context>

<pallas_src>
import math

import jax
import jax.numpy as jnp
from jax.experimental import pallas as pl
from jax.experimental.pallas import tpu as pltpu

# ---- problem sizes (small, consistent with the module defaults scaled down) ----
B = 2            # batch
N = 8            # sequence length (dim summed by value head)
F = 16           # raw observation feature dim (encoder input)
E = 32           # embed_dim
H = 64           # hidden_dim
C = 25           # n_constraints (module default)

BN = B * N       # rows fed to the fused matmuls
OUT_W = 128      # lane-dense output width (1 value lane + C dual lanes + padding)

TEMPERATURE = 1.0
MIN_VAL = 0.01
MAX_VAL = 10.0
LOG_SCALE = math.log(MAX_VAL / MIN_VAL)
LOG_MIN = math.log(MIN_VAL)
LEAKY_SLOPE = 0.01  # nn.LeakyReLU default


def _leaky_relu(x):
    return jnp.where(x > 0, x, LEAKY_SLOPE * x)


def critic_kernel(obs_ref,           # (BN, F)
                  wf_ref, bf_ref,    # (F, 2H), (1, 2H)   encoder folded into layer 1
                  w2_ref, b2_ref,    # (2H, OUT_W), (1, OUT_W) block-diag layer 2
                  slab_ref,          # (BN, OUT_W) lane 0 = raw value/T, 1..C = duals
                  val_ref):          # (B, OUT_W)  lane 0 = per-batch summed value/T
    obs = obs_ref[...]

    # TODO(synk): critic_embedding is an injected module with unknown semantics;
    # treated as identity (required for the encoder/layer-1 algebraic fusion).

    # --- fused encoder + layer 1 ([value | dual]) + LeakyReLU: 1 MXU push ---
    a = _leaky_relu(
        jnp.dot(obs, wf_ref[...], preferred_element_type=jnp.float32) + bf_ref[...]
    )  # (BN, 2H) = (BN, 128)

    # --- fused layer 2 (block diagonal): 1 MXU push ---
    # column 0      : per-row value, already scaled by 1/temperature
    # columns 1..C  : raw dual logits
    z = jnp.dot(a, w2_ref[...], preferred_element_type=jnp.float32) + b2_ref[...]

    # LogUniform on dual lanes only (value lane stays raw); MIN_VAL folded
    # into the exponent so the EUP pair (sigmoid, exp) is the only extra work.
    lane = jax.lax.broadcasted_iota(jnp.int32, z.shape, dimension=1)
    act = jnp.exp(jax.nn.sigmoid(z) * LOG_SCALE + LOG_MIN)
    slab_ref[...] = jnp.where(lane == 0, z, act)

    # Per-batch value sum over N rows: a cheap sublane (XLU) reduce per batch,
    # stored as one unmasked lane-dense (B, OUT_W) write. Only lane 0 is real.
    vrows = [
        jnp.sum(z[b * N:(b + 1) * N, :], axis=0, keepdims=True)  # (1, OUT_W)
        for b in range(B)
    ]
    val_ref[...] = jnp.concatenate(vrows, axis=0)


def prepare_fused_params(params):
    """One-time parameter preparation (hoisted out of the per-call hot path)."""
    (we, be, w1v, b1v, w2v, b2v, w1d, b1d, w2d, b2d) = params

    # Fuse value/dual layer-1 weights side by side, then fold the encoder in.
    w1 = jnp.concatenate([w1v, w1d], axis=1)           # (E, 2H)
    b1 = jnp.concatenate([b1v, b1d], axis=1)           # (1, 2H)
    wf = we @ w1                                        # (F, 2H)
    bf = be @ w1 + b1                                   # (1, 2H)

    # Block-diagonal layer 2, with 1/temperature folded into the value column.
    inv_t = jnp.float32(1.0 / TEMPERATURE)
    w2 = jnp.zeros((2 * H, OUT_W), jnp.float32)
    w2 = w2.at[:H, 0:1].set(w2v * inv_t)                # value column
    w2 = w2.at[H:, 1:1 + C].set(w2d)                    # dual columns
    b2 = jnp.zeros((1, OUT_W), jnp.float32)
    b2 = b2.at[:, 0:1].set(b2v * inv_t)
    b2 = b2.at[:, 1:1 + C].set(b2d)

    return (wf, bf, w2, b2)


def critic_forward(obs, fused_params):
    """obs: [B, N, F] float32. Returns (value [B,1,1], lagrangian [B,N,C])."""
    wf, bf, w2, b2 = fused_params
    obs2 = obs.reshape(BN, F)

    vmem = pltpu.MemorySpace.VMEM
    slab, vals = pl.pallas_call(
        critic_kernel,
        out_shape=(
            jax.ShapeDtypeStruct((BN, OUT_W), jnp.float32),
            jax.ShapeDtypeStruct((B, OUT_W), jnp.float32),
        ),
        in_specs=[pl.BlockSpec(memory_space=vmem)] * 5,
        out_specs=(
            pl.BlockSpec(memory_space=vmem),
            pl.BlockSpec(memory_space=vmem),
        ),
        compiler_params=pltpu.CompilerParams(vmem_limit_bytes=8 * 1024 * 1024),
    )(obs2, wf, bf, w2, b2)

    # Only trivial static slices remain in the wrapper.
    val = vals[:, 0].reshape(B, 1, 1)
    dual = slab[:, 1:1 + C].reshape(B, N, C)
    return val, dual


def init_params(key):
    """Deterministic init mimicking PyTorch Linear default (U[-1/sqrt(fan_in), ...])."""
    def linear(k, fan_in, fan_out):
        k1, k2 = jax.random.split(k)
        bound = 1.0 / math.sqrt(fan_in)
        w = jax.random.uniform(k1, (fan_in, fan_out), jnp.float32, -bound, bound)
        b = jax.random.uniform(k2, (1, fan_out), jnp.float32, -bound, bound)
        return w, b

    ks = jax.random.split(key, 5)
    we, be = linear(ks[0], F, E)      # synthetic encoder
    w1v, b1v = linear(ks[1], E, H)    # value head layer 1
    w2v, b2v = linear(ks[2], H, 1)    # value head layer 2
    w1d, b1d = linear(ks[3], E, H)    # dual head layer 1
    w2d, b2d = linear(ks[4], H, C)    # dual head layer 2
    return (we, be, w1v, b1v, w2v, b2v, w1d, b1d, w2d, b2d)


def reference_forward(obs, params):
    (we, be, w1v, b1v, w2v, b2v, w1d, b1d, w2d, b2d) = params
    h = obs @ we + be
    a = _leaky_relu(h @ w1v + b1v)
    v = a @ w2v + b2v
    val = jnp.sum(v, axis=1, keepdims=True) / TEMPERATURE
    d = _leaky_relu(h @ w1d + b1d)
    d = d @ w2d + b2d
    dual = MIN_VAL * jnp.exp(jax.nn.sigmoid(d) * LOG_SCALE)
    return val, dual


if __name__ == "__main__":
    key = jax.random.PRNGKey(0)
    k_obs, k_par = jax.random.split(key)
    obs = jax.random.normal(k_obs, (B, N, F), jnp.float32)
    params = init_params(k_par)

    # One-time parameter prep (fusion happens here, not per forward call).
    fused = jax.block_until_ready(prepare_fused_params(params))

    val, dual = critic_forward(obs, fused)
    val = jax.block_until_ready(val)
    dual = jax.block_until_ready(dual)

    val_ref, dual_ref = reference_forward(obs, params)
    assert val.shape == (B, 1, 1) and dual.shape == (B, N, C)
    assert jnp.allclose(val, val_ref, atol=1e-4, rtol=1e-4)
    assert jnp.allclose(dual, dual_ref, atol=1e-4, rtol=1e-4)

    print("KERNEL_OK")
</pallas_src>

<mosaic_0001>
module attributes {stable_mosaic.version = 11 : i64} {
  func.func @critic_kernel(%arg0: memref<16x16xf32, #tpu.memory_space<vmem>>, %arg1: memref<16x128xf32, #tpu.memory_space<vmem>>, %arg2: memref<1x128xf32, #tpu.memory_space<vmem>>, %arg3: memref<128x128xf32, #tpu.memory_space<vmem>>, %arg4: memref<1x128xf32, #tpu.memory_space<vmem>>, %arg5: memref<16x128xf32, #tpu.memory_space<vmem>>, %arg6: memref<2x128xf32, #tpu.memory_space<vmem>>) attributes {dimension_semantics = [], scalar_prefetch = 0 : i64, scratch_operands = 0 : i64, tpu.core_type = #tpu.core_type<tc>} {
    %c0 = arith.constant 0 : index
    %c0_0 = arith.constant 0 : index
    %0 = vector.load %arg0[%c0, %c0_0] : memref<16x16xf32, #tpu.memory_space<vmem>>, vector<16x16xf32>
    %c0_1 = arith.constant 0 : index
    %c0_2 = arith.constant 0 : index
    %1 = vector.load %arg1[%c0_1, %c0_2] : memref<16x128xf32, #tpu.memory_space<vmem>>, vector<16x128xf32>
    %cst = arith.constant dense<0.000000e+00> : vector<16x128xf32>
    %2 = tpu.matmul %0, %1, %cst {dimension_numbers = #tpu.dot_dimension_numbers<[1], [0], [0], [1], [0, 0, 1, 1], [], []>} : vector<16x16xf32>, vector<16x128xf32>, vector<16x128xf32> -> vector<16x128xf32>
    %c0_3 = arith.constant 0 : index
    %c0_4 = arith.constant 0 : index
    %3 = vector.load %arg2[%c0_3, %c0_4] : memref<1x128xf32, #tpu.memory_space<vmem>>, vector<1x128xf32>
    %4 = vector.broadcast %3 : vector<1x128xf32> to vector<16x128xf32>
    %5 = arith.addf %2, %4 : vector<16x128xf32>
    %cst_5 = arith.constant 0.000000e+00 : f32
    %6 = vector.broadcast %cst_5 : f32 to vector<16x128xf32>
    %7 = arith.cmpf ogt, %5, %6 : vector<16x128xf32>
    %cst_6 = arith.constant 0.00999999977 : f32
    %8 = vector.broadcast %cst_6 : f32 to vector<16x128xf32>
    %9 = arith.mulf %8, %5 : vector<16x128xf32>
    %10 = arith.select %7, %5, %9 : vector<16x128xi1>, vector<16x128xf32>
    %c0_7 = arith.constant 0 : index
    %c0_8 = arith.constant 0 : index
    %11 = vector.load %arg3[%c0_7, %c0_8] : memref<128x128xf32, #tpu.memory_space<vmem>>, vector<128x128xf32>
    %cst_9 = arith.constant dense<0.000000e+00> : vector<16x128xf32>
    %12 = tpu.matmul %10, %11, %cst_9 {dimension_numbers = #tpu.dot_dimension_numbers<[1], [0], [0], [1], [0, 0, 1, 1], [], []>} : vector<16x128xf32>, vector<128x128xf32>, vector<16x128xf32> -> vector<16x128xf32>
    %c0_10 = arith.constant 0 : index
    %c0_11 = arith.constant 0 : index
    %13 = vector.load %arg4[%c0_10, %c0_11] : memref<1x128xf32, #tpu.memory_space<vmem>>, vector<1x128xf32>
    %14 = vector.broadcast %13 : vector<1x128xf32> to vector<16x128xf32>
    %15 = arith.addf %12, %14 : vector<16x128xf32>
    %16 = tpu.iota {dimensions = array<i32: 1>} : vector<16x128xi32>
    %17 = arith.negf %15 : vector<16x128xf32>
    %18 = math.exp %17 : vector<16x128xf32>
    %cst_12 = arith.constant 1.000000e+00 : f32
    %19 = vector.broadcast %cst_12 : f32 to vector<16x128xf32>
    %20 = arith.addf %19, %18 : vector<16x128xf32>
    %21 = arith.divf %19, %20 : vector<16x128xf32>
    %cst_13 = arith.constant 6.90775537 : f32
    %22 = vector.broadcast %cst_13 : f32 to vector<16x128xf32>
    %23 = arith.mulf %21, %22 : vector<16x128xf32>
    %cst_14 = arith.constant -4.60517025 : f32
    %24 = vector.broadcast %cst_14 : f32 to vector<16x128xf32>
    %25 = arith.addf %23, %24 : vector<16x128xf32>
    %26 = math.exp %25 : vector<16x128xf32>
    %c0_i32 = arith.constant 0 : i32
    %27 = vector.broadcast %c0_i32 : i32 to vector<16x128xi32>
    %28 = arith.cmpi eq, %16, %27 : vector<16x128xi32>
    %29 = arith.select %28, %15, %26 : vector<16x128xi1>, vector<16x128xf32>
    %c0_15 = arith.constant 0 : index
    %c0_16 = arith.constant 0 : index
    %30 = vector.load %arg5[%c0_15, %c0_16] : memref<16x128xf32, #tpu.memory_space<vmem>>, vector<16x128xf32>
    tpu.vector_store %arg5[%c0_15, %c0_16], %29 {strides = array<i32>} : memref<16x128xf32, #tpu.memory_space<vmem>>, vector<16x128xf32>,
    %31 = vector.extract_strided_slice %15 {offsets = [0, 0], sizes = [8, 128], strides = [1, 1]} : vector<16x128xf32> to vector<8x128xf32>
    %cst_17 = arith.constant dense<0.000000e+00> : vector<128xf32>
    %32 = vector.multi_reduction <add>, %31, %cst_17 [0] : vector<8x128xf32> to vector<128xf32>
    %33 = vector.shape_cast %32 : vector<128xf32> to vector<1x128xf32>
    %34 = vector.extract_strided_slice %15 {offsets = [8, 0], sizes = [8, 128], strides = [1, 1]} : vector<16x128xf32> to vector<8x128xf32>
    %cst_18 = arith.constant dense<0.000000e+00> : vector<128xf32>
    %35 = vector.multi_reduction <add>, %34, %cst_18 [0] : vector<8x128xf32> to vector<128xf32>
    %36 = vector.shape_cast %35 : vector<128xf32> to vector<1x128xf32>
    %37 = tpu.concatenate %33, %36 in 0 : vector<1x128xf32>, vector<1x128xf32> -> vector<2x128xf32>
    %c0_19 = arith.constant 0 : index
    %c0_20 = arith.constant 0 : index
    %38 = vector.load %arg6[%c0_19, %c0_20] : memref<2x128xf32, #tpu.memory_space<vmem>>, vector<2x128xf32>
    tpu.vector_store %arg6[%c0_19, %c0_20], %37 {strides = array<i32>} : memref<2x128xf32, #tpu.memory_space<vmem>>, vector<2x128xf32>,
    return
  }
}

</mosaic_0001>

<llo_original>
// kernel: tpu_custom_call.1
$region0: #{tpu_custom_call.1}
  #allocation0 [shape = 'u32[]', space=smem, size = 0x4, offset = 0x4, fixed_abs, tag = 'smem constant byte address 0x4 - core index']
  #allocation1 [shape = 'u32[144,128]{1,0:T(1,128)}', space=vmem, size = 0x12000, scoped, tag = 'internal scratch']
  %s0 = inlined_call_operand.hbm [shape: f32[16,16], index: 0, kind: input, shape index: {}]
  %s1 = inlined_call_operand.hbm [shape: f32[16,128], index: 1, kind: input, shape index: {}]
  %s2 = inlined_call_operand.vmem [shape: f32[1,128], index: 2, kind: input, shape index: {}]
  %s3 = inlined_call_operand.hbm [shape: f32[128,128], index: 3, kind: input, shape index: {}]
  %s4 = inlined_call_operand.vmem [shape: f32[1,128], index: 4, kind: input, shape index: {}]
  %s5 = inlined_call_operand.hbm [shape: f32[16,128], index: 5, kind: output, shape index: {0}]
  %s6 = inlined_call_operand.hbm [shape: f32[2,128], index: 6, kind: output, shape index: {1}]
  %7 = xla_tuple %s5, %s6
  %s8 = sld [smem:[#allocation0]]
  $region50: #{tpu_custom_call.1} parent=0
    _
  %s10 = ssub.s32 1, %s8
  %s11 = scalar_select 0, %s10, %s8
  $region1: #{tpu_custom_call.1} parent=0
    #allocation2 [shape = 'u8[8192]{0}', space=vmem, size = 0x2000, scoped, tag = 'input window, operand 0, single buffered']
    #allocation3 [shape = 's32[1]{0}', space=sflag, size = 0x4, scoped, tag = 'scoped memory for tpu_custom_call.1']
    #allocation4 [shape = 's32[1]{0}', space=sflag, size = 0x4, scoped, tag = 'scoped memory for tpu_custom_call.1']
    #allocation5 [shape = 'u8[8192]{0}', space=vmem, size = 0x2000, scoped, tag = 'input window, operand 1, single buffered']
    #allocation6 [shape = 's32[1]{0}', space=sflag, size = 0x4, scoped, tag = 'scoped memory for tpu_custom_call.1']
    #allocation7 [shape = 'u8[65536]{0}', space=vmem, size = 0x10000, scoped, tag = 'input window, operand 3, single buffered']
    #allocation8 [shape = 'u8[8192]{0}', space=vmem, size = 0x2000, scoped, tag = 'output window, operand 0, single buffered']
    #allocation9 [shape = 'u8[1024]{0}', space=vmem, size = 0x400, scoped, tag = 'output window, operand 1, single buffered']
    #allocation10 [shape = 's32[1]{0}', space=sflag, size = 0x4, scoped, tag = 'scoped memory for tpu_custom_call.1']
    %12 = vsyncpa [#allocation3], 0
    %13 = vsyncpa [#allocation6], 0
    %14 = vsyncpa [#allocation4], 0
    %15 = vsyncpa [#allocation10], 0
    // Predicated region
    $region2: #{tpu_custom_call.1} parent=1 // pred_check
      _
    $region3: #{tpu_custom_call.1} parent=1 // pred_check_branch
      %17 = sbr.rel (0) target = $region5
    $region4: #{tpu_custom_call.1} parent=1 // pred_region
      %s19 = ssub.s32 256, 256
      %20 = vsyncadd [#allocation3], %s19
      %s21 = sshll.u32 [#allocation2], 4
      %s22 = int_to_ptr.vmem [resolvable:$true] %s21
      %27 = dma.hbm_to_vmem [thread:$0]  %s0, 256, %s22, [#allocation3], 128, 128, 8
    $region5: #{tpu_custom_call.1} parent=1 // pred_fallthru
      _
    // Predicated region
    $region6: #{tpu_custom_call.1} parent=1 // pred_check
      _
    $region7: #{tpu_custom_call.1} parent=1 // pred_check_branch
      %29 = sbr.rel (0) target = $region9
    $region8: #{tpu_custom_call.1} parent=1 // pred_region
      %s31 = ssub.s32 256, 256
      %32 = vsyncadd [#allocation6], %s31
      %s33 = sshll.u32 [#allocation5], 4
      %s34 = int_to_ptr.vmem [resolvable:$true] %s33
      %39 = dma.hbm_to_vmem [thread:$0]  %s1, 256, %s34, [#allocation6], 128, 128, 8
    $region9: #{tpu_custom_call.1} parent=1 // pred_fallthru
      _
    // Predicated region
    $region10: #{tpu_custom_call.1} parent=1 // pred_check
      _
    $region11: #{tpu_custom_call.1} parent=1 // pred_check_branch
      %41 = sbr.rel (0) target = $region13
    $region12: #{tpu_custom_call.1} parent=1 // pred_region
      _
    $region13: #{tpu_custom_call.1} parent=1 // pred_fallthru
      _
    // Predicated region
    $region14: #{tpu_custom_call.1} parent=1 // pred_check
      _
    $region15: #{tpu_custom_call.1} parent=1 // pred_check_branch
      %43 = sbr.rel (0) target = $region17
    $region16: #{tpu_custom_call.1} parent=1 // pred_region
      %s45 = ssub.s32 2048, 2048
      %46 = vsyncadd [#allocation6], %s45
      %s47 = sshll.u32 [#allocation7], 4
      %s48 = int_to_ptr.vmem [resolvable:$true] %s47
      %53 = dma.hbm_to_vmem [thread:$0]  %s3, 2048, %s48, [#allocation6], 128, 128, 8
    $region17: #{tpu_custom_call.1} parent=1 // pred_fallthru
      _
    // Predicated region
    $region18: #{tpu_custom_call.1} parent=1 // pred_check
      _
    $region19: #{tpu_custom_call.1} parent=1 // pred_check_branch
      %55 = sbr.rel (0) target = $region21
    $region20: #{tpu_custom_call.1} parent=1 // pred_region
      _
    $region21: #{tpu_custom_call.1} parent=1 // pred_fallthru
      _
    // Predicated region
    $region22: #{tpu_custom_call.1} parent=1 // pred_check
      _
    $region23: #{tpu_custom_call.1} parent=1 // pred_check_branch
      %57 = sbr.rel (0) target = $region25
    $region24: #{tpu_custom_call.1} parent=1 // pred_region
      %58 = dma.done [#allocation3], 256
    $region25: #{tpu_custom_call.1} parent=1 // pred_fallthru
      _
    // Predicated region
    $region26: #{tpu_custom_call.1} parent=1 // pred_check
      _
    $region27: #{tpu_custom_call.1} parent=1 // pred_check_branch
      %60 = sbr.rel (0) target = $region29
    $region28: #{tpu_custom_call.1} parent=1 // pred_region
      %61 = dma.done [#allocation6], 256
    $region29: #{tpu_custom_call.1} parent=1 // pred_fallthru
      _
    // Predicated region
    $region30: #{tpu_custom_call.1} parent=1 // pred_check
      _
    $region31: #{tpu_custom_call.1} parent=1 // pred_check_branch
      %63 = sbr.rel (0) target = $region33
    $region32: #{tpu_custom_call.1} parent=1 // pred_region
      %64 = dma.done [#allocation6], 2048
    $region33: #{tpu_custom_call.1} parent=1 // pred_fallthru
      _
    %v65 = vld [vmem:[#allocation2] sm:$0xff]
    %v66 = vld [vmem:[#allocation2 + $0x8] sm:$0xff]
    %v67 = vld [vmem:[#allocation5] sm:$0xff]
    %v68 = vld [vmem:[#allocation5 + $0x8] sm:$0xff]
    %v69 = vld [vmem:[%s2] sm:$0x1]
    %v71 = vlaneseq
    %v72 = vshrl.u32 %v71, 7
    %v73 = vsub.s32 0, %v72
    %v74 = vrot.slane %v69, %v73
    %vm76 = vcmask 130048
    %v78 = vsel %vm76, %v65, 0
    %v81 = vsel %vm76, %v66, 0
    %83 = vmatprep.subr.mxu0 0.0
    %84 = vmatpush1.msra.mxu0 %v67
    %85 = vmatprep.subr.mxu0 0.0
    %86 = vmatpush1.msra.mxu0 %v68
    %87 = vmatprep.subr.mxu0 0.0
    %88 = vmatpush1.msra.mxu0 0.0
    %89 = vmatprep.subr.mxu0 0.0
    %90 = vmatpush1.msra.mxu0 0.0
    %91 = vmatprep.subr.mxu0 0.0
    %92 = vmatpush1.msra.mxu0 0.0
    %93 = vmatprep.subr.mxu0 0.0
    %94 = vmatpush1.msra.mxu0 0.0
    %95 = vmatprep.subr.mxu0 0.0
    %96 = vmatpush1.msra.mxu0 0.0
    %97 = vmatprep.subr.mxu0 0.0
    %98 = vmatpush1.msra.mxu0 0.0
    %99 = vmatprep.subr.mxu0 0.0
    %100 = vmatpush1.msra.mxu0 0.0
    %101 = vmatprep.subr.mxu0 0.0
    %102 = vmatpush1.msra.mxu0 0.0
    %103 = vmatprep.subr.mxu0 0.0
    %104 = vmatpush1.msra.mxu0 0.0
    %105 = vmatprep.subr.mxu0 0.0
    %106 = vmatpush1.msra.mxu0 0.0
    %107 = vmatprep.subr.mxu0 0.0
    %108 = vmatpush1.msra.mxu0 0.0
    %109 = vmatprep.subr.mxu0 0.0
    %110 = vmatpush1.msra.mxu0 0.0
    %111 = vmatprep.subr.mxu0 0.0
    %112 = vmatpush1.msra.mxu0 0.0
    %113 = vmatprep.subr.mxu0 0.0
    %114 = vmatpush1.msra.mxu0 0.0
    %115 = vmatprep.subr.mxu0 0.0
    %116 = vmatpush1.msra.mxu0 0.0
    %117 = vmatprep.subr.mxu0 0.0
    %118 = vmatpush1.msra.mxu0 0.0
    %119 = vmatprep.subr.mxu0 0.0
    %120 = vmatpush1.msra.mxu0 0.0
    %121 = vmatprep.subr.mxu0 0.0
    %122 = vmatpush1.msra.mxu0 0.0
    %123 = vmatprep.subr.mxu0 0.0
    %124 = vmatpush1.msra.mxu0 0.0
    %125 = vmatprep.subr.mxu0 0.0
    %126 = vmatpush1.msra.mxu0 0.0
    %127 = vmatprep.subr.mxu0 0.0
    %128 = vmatpush1.msra.mxu0 0.0
    %129 = vmatprep.subr.mxu0 0.0
    %130 = vmatpush1.msra.mxu0 0.0
    %131 = vmatprep.subr.mxu0 0.0
    %132 = vmatpush1.msra.mxu0 0.0
    %133 = vmatprep.subr.mxu0 0.0
    %134 = vmatpush1.msra.mxu0 0.0
    %135 = vmatprep.subr.mxu0 0.0
    %136 = vmatpush1.msra.mxu0 0.0
    %137 = vmatprep.subr.mxu0 0.0
    %138 = vmatpush1.msra.mxu0 0.0
    %139 = vmatprep.subr.mxu0 0.0
    %140 = vmatpush1.msra.mxu0 0.0
    %141 = vmatprep.subr.mxu0 0.0
    %142 = vmatpush1.msra.mxu0 0.0
    %143 = vmatprep.subr.mxu0 0.0
    %144 = vmatpush1.msra.mxu0 0.0
    %145 = vmatprep.subr.mxu0 0.0
    %146 = vmatpush1.msra.mxu0 0.0
    %147 = vmatprep.mubr.f32.mxu0 0.0
    %148 = vmatmul.mubr.f32.gmra.mrb[0].mxu0 %v78
    %v149 = vpop.f32.mrb[0].mxu0
    %v150 = vadd.f32 %v74, %v149
    %v151 = vpop.f32.mrb[0].mxu0
    %152 = vmatprep.mubr.f32.mxu0 0.0
    %153 = vmatmul.mubr.f32.gmra.mrb[0].mxu0 %v81
    %v154 = vpop.f32.mrb[0].mxu0
    %v155 = vadd.f32 %v74, %v154
    %v156 = vpop.f32.mrb[0].mxu0
    %157 = vdwg.mxu0
    %vm158 = vcmp.gt.f32.partialorder %v150, 0.0
    %vm159 = vcmp.gt.f32.partialorder %v155, 0.0
    %v160 = vmul.f32 %v150, 0.01
    %v161 = vmul.f32 %v155, 0.01
    %v162 = vsel %vm158, %v150, %v160
    %v163 = vsel %vm159, %v155, %v161
    %v164 = vld [vmem:[#allocation7] sm:$0xff]
    %v165 = vld [vmem:[#allocation7 + $0x8] sm:$0xff]
    %v166 = vld [vmem:[#allocation7 + $0x10] sm:$0xff]
    %v167 = vld [vmem:[#allocation7 + $0x18] sm:$0xff]
    %v168 = vld [vmem:[#allocation7 + $0x20] sm:$0xff]
    %v169 = vld [vmem:[#allocation7 + $0x28] sm:$0xff]
    %v170 = vld [vmem:[#allocation7 + $0x30] sm:$0xff]
    %v171 = vld [vmem:[#allocation7 + $0x38] sm:$0xff]
    %v172 = vld [vmem:[#allocation7 + $0x40] sm:$0xff]
    %v173 = vld [vmem:[#allocation7 + $0x48] sm:$0xff]
    %v174 = vld [vmem:[#allocation7 + $0x50] sm:$0xff]
    %v175 = vld [vmem:[#allocation7 + $0x58] sm:$0xff]
    %v176 = vld [vmem:[#allocation7 + $0x60] sm:$0xff]
    %v177 = vld [vmem:[#allocation7 + $0x68] sm:$0xff]
    %v178 = vld [vmem:[#allocation7 + $0x70] sm:$0xff]
    %v179 = vld [vmem:[#allocation7 + $0x78] sm:$0xff]
    %v180 = vld [vmem:[%s4] sm:$0x1]
    %v182 = vlaneseq
    %v183 = vshrl.u32 %v182, 7
    %v184 = vsub.s32 0, %v183
    %v185 = vrot.slane %v180, %v184
    %187 = vmatprep.subr.mxu0 0.0
    %188 = vmatpush1.msra.mxu0 %v164
    %189 = vmatprep.subr.mxu0 0.0
    %190 = vmatpush1.msra.mxu0 %v165
    %191 = vmatprep.subr.mxu0 0.0
    %192 = vmatpush1.msra.mxu0 %v166
    %193 = vmatprep.subr.mxu0 0.0
    %194 = vmatpush1.msra.mxu0 %v167
    %195 = vmatprep.subr.mxu0 0.0
    %196 = vmatpush1.msra.mxu0 %v168
    %197 = vmatprep.subr.mxu0 0.0
    %198 = vmatpush1.msra.mxu0 %v169
    %199 = vmatprep.subr.mxu0 0.0
    %200 = vmatpush1.msra.mxu0 %v170
    %201 = vmatprep.subr.mxu0 0.0
    %202 = vmatpush1.msra.mxu0 %v171
    %203 = vmatprep.subr.mxu0 0.0
    %204 = vmatpush1.msra.mxu0 %v172
    %205 = vmatprep.subr.mxu0 0.0
    %206 = vmatpush1.msra.mxu0 %v173
    %207 = vmatprep.subr.mxu0 0.0
    %208 = vmatpush1.msra.mxu0 %v174
    %209 = vmatprep.subr.mxu0 0.0
    %210 = vmatpush1.msra.mxu0 %v175
    %211 = vmatprep.subr.mxu0 0.0
    %212 = vmatpush1.msra.mxu0 %v176
    %213 = vmatprep.subr.mxu0 0.0
    %214 = vmatpush1.msra.mxu0 %v177
    %215 = vmatprep.subr.mxu0 0.0
    %216 = vmatpush1.msra.mxu0 %v178
    %217 = vmatprep.subr.mxu0 0.0
    %218 = vmatpush1.msra.mxu0 %v179
    %219 = vmatprep.subr.mxu0 0.0
    %220 = vmatpush1.msra.mxu0 0.0
    %221 = vmatprep.subr.mxu0 0.0
    %222 = vmatpush1.msra.mxu0 0.0
    %223 = vmatprep.subr.mxu0 0.0
    %224 = vmatpush1.msra.mxu0 0.0
    %225 = vmatprep.subr.mxu0 0.0
    %226 = vmatpush1.msra.mxu0 0.0
    %227 = vmatprep.subr.mxu0 0.0
    %228 = vmatpush1.msra.mxu0 0.0
    %229 = vmatprep.subr.mxu0 0.0
    %230 = vmatpush1.msra.mxu0 0.0
    %231 = vmatprep.subr.mxu0 0.0
    %232 = vmatpush1.msra.mxu0 0.0
    %233 = vmatprep.subr.mxu0 0.0
    %234 = vmatpush1.msra.mxu0 0.0
    %235 = vmatprep.subr.mxu0 0.0
    %236 = vmatpush1.msra.mxu0 0.0
    %237 = vmatprep.subr.mxu0 0.0
    %238 = vmatpush1.msra.mxu0 0.0
    %239 = vmatprep.subr.mxu0 0.0
    %240 = vmatpush1.msra.mxu0 0.0
    %241 = vmatprep.subr.mxu0 0.0
    %242 = vmatpush1.msra.mxu0 0.0
    %243 = vmatprep.subr.mxu0 0.0
    %244 = vmatpush1.msra.mxu0 0.0
    %245 = vmatprep.subr.mxu0 0.0
    %246 = vmatpush1.msra.mxu0 0.0
    %247 = vmatprep.subr.mxu0 0.0
    %248 = vmatpush1.msra.mxu0 0.0
    %249 = vmatprep.subr.mxu0 0.0
    %250 = vmatpush1.msra.mxu0 0.0
    %251 = vmatprep.mubr.f32.mxu0 0.0
    %252 = vmatmul.mubr.f32.gmra.mrb[0].mxu0 %v162
    %v253 = vpop.f32.mrb[0].mxu0
    %v254 = vadd.f32 %v185, %v253
    %v255 = vpop.f32.mrb[0].mxu0
    %256 = vmatprep.mubr.f32.mxu0 0.0
    %257 = vmatmul.mubr.f32.gmra.mrb[0].mxu0 %v163
    %v258 = vpop.f32.mrb[0].mxu0
    %v259 = vadd.f32 %v185, %v258
    %v260 = vpop.f32.mrb[0].mxu0
    %261 = vdwg.mxu0
    %v262 = vlaneseq
    %v263 = vand.u32 %v262, 127
    %v264 = vxor.u32 %v254, 2147483648
    %v265 = vxor.u32 %v259, 2147483648
    %v266 = vmul.f32 %v264, 1.442695
    %v267 = vpow.pop %v266
    %v268 = vmul.f32 %v265, 1.442695
    %v269 = vpow.pop %v268
    %v270 = vadd.f32 %v267, 1.0
    %v271 = vadd.f32 %v269, 1.0
    %v272 = vrcp.pop %v270
    %v273 = vmul.f32 1.0, %v272
    %v274 = vrcp.pop %v271
    %v275 = vmul.f32 1.0, %v274
    %v276 = vmul.f32 %v273, 6.9077554
    %v277 = vmul.f32 %v275, 6.9077554
    %v278 = vadd.f32 %v276, -4.6051702
    %v279 = vadd.f32 %v277, -4.6051702
    %v280 = vmul.f32 %v278, 1.442695
    %v281 = vpow.pop %v280
    %v282 = vmul.f32 %v279, 1.442695
    %v283 = vpow.pop %v282
    %vm284 = vcmp.eq.s32.totalorder %v263, 0
    %v285 = vsel %vm284, %v254, %v281
    %v286 = vsel %vm284, %v259, %v283
    %287 = vst [vmem:[#allocation8] sm:$0xff] %v285
    %288 = vst [vmem:[#allocation8 + $0x8] sm:$0xff] %v286
    %v289 = vrot.slane %v254, 4
    %v290 = vadd.f32 %v254, %v289
    %v291 = vrot.slane %v290, 2
    %v292 = vadd.f32 %v290, %v291
    %v293 = vrot.slane %v292, 1
    %v294 = vadd.f32 %v292, %v293
    %v295 = vrot.slane %v259, 4
    %v296 = vadd.f32 %v259, %v295
    %v297 = vrot.slane %v296, 2
    %v298 = vadd.f32 %v296, %v297
    %v299 = vrot.slane %v298, 1
    %v300 = vadd.f32 %v298, %v299
    %vm301 = vcmask 1040384
    %v302 = vsel %vm301, %v294, %v300
    %303 = vst [vmem:[#allocation9] sm:$0x3] %v302
    // Predicated region
    $region34: #{tpu_custom_call.1} parent=1 // pred_check
      _
    $region35: #{tpu_custom_call.1} parent=1 // pred_check_branch
      %305 = sbr.rel (0) target = $region37
    $region36: #{tpu_custom_call.1} parent=1 // pred_region
      %s307 = ssub.s32 256, 256
      %308 = vsyncadd [#allocation4], %s307
      %s309 = sshll.u32 [#allocation8], 4
      %s310 = int_to_ptr.vmem [resolvable:$true] %s309
      %315 = dma.vmem_to_hbm [thread:$0]  %s310, 256, %s5, [#allocation4], 128, 128, 8
    $region37: #{tpu_custom_call.1} parent=1 // pred_fallthru
      _
    // Predicated region
    $region38: #{tpu_custom_call.1} parent=1 // pred_check
      _
    $region39: #{tpu_custom_call.1} parent=1 // pred_check_branch
      %317 = sbr.rel (0) target = $region41
    $region40: #{tpu_custom_call.1} parent=1 // pred_region
      %s319 = ssub.s32 32, 32
      %320 = vsyncadd [#allocation10], %s319
      %s322 = sshll.u32 [#allocation9], 4
      %s323 = int_to_ptr.vmem [resolvable:$true] %s322
      %325 = dma.vmem_to_hbm [thread:$0]  %s323, 32, %s6, [#allocation10]
    $region41: #{tpu_custom_call.1} parent=1 // pred_fallthru
      _
    // Predicated region
    $region42: #{tpu_custom_call.1} parent=1 // pred_check
      _
    $region43: #{tpu_custom_call.1} parent=1 // pred_check_branch
      %327 = sbr.rel (0) target = $region45
    $region44: #{tpu_custom_call.1} parent=1 // pred_region
      %328 = dma.done [#allocation4], 256
    $region45: #{tpu_custom_call.1} parent=1 // pred_fallthru
      _
    // Predicated region
    $region46: #{tpu_custom_call.1} parent=1 // pred_check
      _
    $region47: #{tpu_custom_call.1} parent=1 // pred_check_branch
      %330 = sbr.rel (0) target = $region49
    $region48: #{tpu_custom_call.1} parent=1 // pred_region
      %331 = dma.done [#allocation10], 32
    $region49: #{tpu_custom_call.1} parent=1 // pred_fallthru
      _
    %332 = vsyncpa [#allocation3], 1
    %333 = vsyncpa [#allocation6], 1
    %334 = vsyncpa [#allocation4], 1
    %335 = vsyncpa [#allocation10], 1

</llo_original>
